<compile_context>
chip_gen: v7x
topology: tpu7x:2x2x1
jax: 0.10.0
libtpu: 0.0.40
codegen_flags: <defaults>
</compile_context>

<pallas_src>
import jax
import jax.numpy as jnp
from jax import lax
from jax.experimental import pallas as pl
from jax.experimental.pallas import tpu as pltpu

W_WIN = 5          # 5x5 local window (as in calc_mean)
PAD = 2            # F.pad(..., (2,2,2,2))
GRAY_COEFFS = (65.738 / 256.0, 129.057 / 256.0, 25.064 / 256.0)
_EPS = 1e-4
_TOP = 8           # zero rows above band 0 (multiple of 8 -> every band starts aligned)
_BOT = 8           # zero rows below the last band (slack for the shifted row reads)


def _round_up(x, m):
    return (x + m - 1) // m * m


def _vmem_limit_bytes():
    """Generation-aware scoped-VMEM limit (leave ~25% physical headroom)."""
    phys = 64 * 1024 * 1024            # conservative default (v7x per-core VMEM)
    try:
        cap = getattr(pltpu.get_tpu_info(), "vmem_capacity_bytes", None)
        if cap:
            phys = int(cap)
    except Exception:
        pass
    return max(32 * 1024 * 1024, min(phys * 3 // 4, 112 * 1024 * 1024))


def _pick_batch_tile(N, H, W, h_img, w_al, in_bytes, budget_bytes):
    """Images per grid step: largest divisor of N whose working set (I/O blocks,
    scratch bands AND live temporaries) fits the budget, capped so the grid
    keeps >= 2 steps (keeps both v7x TensorCores busy under 'parallel')."""
    plane = h_img * w_al * 4
    per_image = (
        2 * (2 * 3 * H * W * in_bytes + H * W * 4)   # double-buffered I/O blocks
        + 3 * plane                                  # gray / product scratch bands
        + 7 * plane                                  # live value planes during the passes
    )
    cap = 1 if N < 2 else min(max(1, N // 2), 32)
    best = 1
    for d in range(1, cap + 1):
        if N % d == 0 and d * per_image <= budget_bytes:
            best = d
    return best


def _make_kernel(b_tile, H, W, h_img, w_al):
    R = b_tile * h_img                  # rows of the working stack (multiple of 8)
    margin = w_al - W                   # zero lanes to the right of the image
    inv = 1.0 / float(W_WIN * W_WIN)
    c0, c1, c2 = GRAY_COEFFS

    def kernel(pred_ref, gt_ref, corr_ref, psum_ref, xs_ref, ys_ref, p_ref):
        s_rows = xs_ref.shape[0]

        # ---- (re)zero the margins of the gray stacks ---------------------
        # Band interiors are fully overwritten below; only the margins must be
        # zero (they ARE the reference's zero padding for the window sums).
        # Never gate this on program_id==0: under megacore sharding of the
        # 'parallel' grid axis the second core never runs step 0.
        if margin > 0:
            # Thin valid strip inside a wider 128-lane tile: one aligned
            # full-plane clear is simpler/cheaper than many strip stores.
            xs_ref[...] = jnp.zeros_like(xs_ref)
            ys_ref[...] = jnp.zeros_like(ys_ref)
        else:
            # Lane-dense W: clear only the inter-band row strips.  Strip starts
            # are rounded down to 8 rows (aligned, unmasked stores); the few
            # overwritten data rows are refilled by the gray stores below.
            for ref in (xs_ref, ys_ref):
                ref[0:_TOP, :] = jnp.zeros((_TOP, w_al), jnp.float32)
                for b in range(b_tile):
                    lo = _TOP + b * h_img + (H // 8) * 8
                    hi = _TOP + (b + 1) * h_img if b + 1 < b_tile else s_rows
                    ref[lo:hi, :] = jnp.zeros((hi - lo, w_al), jnp.float32)

        # ---- RGB -> gray, one sublane band per image ---------------------
        for b in range(b_tile):
            r0 = _TOP + b * h_img        # multiple of 8 -> aligned stores
            xg = (pred_ref[b, 0, :, :].astype(jnp.float32) * c0
                  + pred_ref[b, 1, :, :].astype(jnp.float32) * c1
                  + pred_ref[b, 2, :, :].astype(jnp.float32) * c2)
            yg = (gt_ref[b, 0, :, :].astype(jnp.float32) * c0
                  + gt_ref[b, 1, :, :].astype(jnp.float32) * c1
                  + gt_ref[b, 2, :, :].astype(jnp.float32) * c2)
            xs_ref[r0:r0 + H, 0:W] = xg
            ys_ref[r0:r0 + H, 0:W] = yg

        # Lane-index plane for halo masking; only needed when the image is
        # lane dense (no >= 2 zero lanes to absorb the roll wraparound).
        col_idx = (lax.broadcasted_iota(jnp.int32, (R, w_al), 1)
                   if margin < PAD else None)

        def vsum(ref):
            # 5-tap row (sublane) box sum: address-offset reads of the scratch
            # plane through the load slots -- no XLU work.  The zero margins
            # between bands make cross-band reads read zeros only.
            acc = ref[pl.ds(_TOP - PAD, R), :]
            for d in range(1, W_WIN):
                acc = acc + ref[pl.ds(_TOP - PAD + d, R), :]
            return acc

        def hsum(col):
            # 5-tap column (lane) box sum via XLU rolls.  pltpu.roll matches
            # jnp.roll: roll(x, s, 1)[:, c] = x[:, (c - s) % w_al].
            out = col
            for d in range(1, PAD + 1):
                plus = pltpu.roll(col, w_al - d, 1)    # [:, c] = col[:, c + d]
                minus = pltpu.roll(col, d, 1)          # [:, c] = col[:, c - d]
                if margin < d:
                    # Wrapped lanes would read valid data from the other edge;
                    # the reference's zero padding makes those taps 0.
                    plus = jnp.where(col_idx >= w_al - d, 0.0, plus)
                    minus = jnp.where(col_idx < d, 0.0, minus)
                out = out + plus + minus
            return out

        def box_mean(ref):
            return hsum(vsum(ref)) * inv

        # ---- interleaved finalisation (keeps the live set small) ---------
        ex = box_mean(xs_ref)                          # E[X]
        ey = box_mean(ys_ref)                          # E[Y]

        p_ref[...] = xs_ref[...] * ys_ref[...]
        num = box_mean(p_ref) - ex * ey                # E[XY] - E[X]E[Y]

        p_ref[...] = xs_ref[...] * xs_ref[...]
        s2x = box_mean(p_ref) - ex * ex                # sigma^2_X

        p_ref[...] = ys_ref[...] * ys_ref[...]
        s2y = box_mean(p_ref) - ey * ey                # sigma^2_Y

        # rsqrt goes to the EUP slot; keep f32 to protect the cancellation.
        corr = jnp.abs(num * lax.rsqrt(s2x * s2y + _EPS))

        # ---- per-image maps + a per-step partial sum for the loss --------
        total = jnp.float32(0.0)
        for b in range(b_tile):
            r0 = b * h_img               # band b's output rows in the stack frame
            band = corr[r0:r0 + H, 0:W]
            corr_ref[b, :, :] = band
            total = total + jnp.sum(band)
        psum_ref[...] = jnp.broadcast_to(total, psum_ref.shape)

    return kernel


def correlation_loss(pred, gt, *, batch_tile=None):
    """Pallas equivalent of CorrelationLoss.forward.

    pred, gt: (N, 3, H, W).  Returns (mean(1 - corr), corr) with corr shaped
    (N, 1, H, W) like the PyTorch module.
    """
    N, C, H, W = pred.shape
    assert C == 3, "CorrelationLoss expects RGB (C=3) inputs"
    assert gt.shape == pred.shape

    # bf16/f16 inputs are DMA'd as-is and upcast in-kernel; others go to f32.
    if (pred.dtype != gt.dtype
            or pred.dtype not in (jnp.float32, jnp.bfloat16, jnp.float16)):
        pred = pred.astype(jnp.float32)
        gt = gt.astype(jnp.float32)
    in_bytes = jnp.dtype(pred.dtype).itemsize

    h_img = _round_up(H + PAD, 8)        # >= PAD zero rows between stacked bands
    w_al = _round_up(W, 128)             # lane-dense (halo handled by masked rolls)

    vmem_limit = _vmem_limit_bytes()
    if batch_tile is None:
        batch_tile = _pick_batch_tile(N, H, W, h_img, w_al, in_bytes,
                                      int(vmem_limit * 0.7))
    assert N % batch_tile == 0
    num_steps = N // batch_tile
    s_rows = _TOP + batch_tile * h_img + _BOT

    kernel = _make_kernel(batch_tile, H, W, h_img, w_al)

    corr, partials = pl.pallas_call(
        kernel,
        out_shape=(
            jax.ShapeDtypeStruct((N, H, W), jnp.float32),
            jax.ShapeDtypeStruct((num_steps, 8, 128), jnp.float32),
        ),
        grid_spec=pltpu.PrefetchScalarGridSpec(
            num_scalar_prefetch=0,
            grid=(num_steps,),
            in_specs=[
                pl.BlockSpec((batch_tile, 3, H, W), lambda n: (n, 0, 0, 0)),
                pl.BlockSpec((batch_tile, 3, H, W), lambda n: (n, 0, 0, 0)),
            ],
            out_specs=[
                pl.BlockSpec((batch_tile, H, W), lambda n: (n, 0, 0)),
                pl.BlockSpec((1, 8, 128), lambda n: (n, 0, 0)),
            ],
            scratch_shapes=[
                pltpu.VMEM((s_rows, w_al), jnp.float32),   # stacked gray(pred) bands
                pltpu.VMEM((s_rows, w_al), jnp.float32),   # stacked gray(gt) bands
                pltpu.VMEM((s_rows, w_al), jnp.float32),   # reused product plane
            ],
        ),
        compiler_params=pltpu.CompilerParams(
            dimension_semantics=("parallel",),
            vmem_limit_bytes=vmem_limit,
        ),
    )(pred, gt)

    corr = corr[:, None, :, :]                       # (N, 1, H, W), match torch
    # mean(1 - corr) from the per-step partial sums: no HBM re-read of corr.
    loss = 1.0 - jnp.sum(partials[:, 0, 0]) / float(N * H * W)
    return loss, corr


def _reference_loss(pred, gt):
    """Pure-JAX reference mirroring the PyTorch module."""
    coeffs = jnp.array([65.738, 129.057, 25.064], jnp.float32) / 256.0

    def gray(x):
        return jnp.sum(x.astype(jnp.float32) * coeffs[None, :, None, None],
                       axis=1, keepdims=True)

    pg, gg = gray(pred), gray(gt)
    pp = jnp.pad(pg, ((0, 0), (0, 0), (PAD, PAD), (PAD, PAD)))
    gp = jnp.pad(gg, ((0, 0), (0, 0), (PAD, PAD), (PAD, PAD)))
    H, W = pg.shape[2], pg.shape[3]

    def box(z):
        acc = jnp.zeros_like(pg)
        for i in range(W_WIN):
            for j in range(W_WIN):
                acc = acc + z[:, :, i:i + H, j:j + W]
        return acc / float(W_WIN * W_WIN)

    EXY, EX, EY = box(pp * gp), box(pp), box(gp)
    s2x = box(pp * pp) - EX ** 2
    s2y = box(gp * gp) - EY ** 2
    corr = jnp.abs((EXY - EX * EY) / jnp.sqrt(s2x * s2y + _EPS))
    return jnp.mean(1.0 - corr), corr


if __name__ == "__main__":
    key = jax.random.PRNGKey(0)
    k1, k2, k3, k4 = jax.random.split(key, 4)

    # Case 1: thumbnails (wide zero lane margin -> no halo masks needed).
    pred = jax.random.uniform(k1, (2, 3, 16, 16), dtype=jnp.float32)
    gt = jax.random.uniform(k2, (2, 3, 16, 16), dtype=jnp.float32)
    loss, corr = jax.jit(correlation_loss)(pred, gt)
    jax.block_until_ready((loss, corr))
    ref_loss, ref_corr = _reference_loss(pred, gt)
    assert corr.shape == (2, 1, 16, 16)
    assert jnp.allclose(corr, ref_corr, rtol=1e-4, atol=1e-4), float(
        jnp.max(jnp.abs(corr - ref_corr)))
    assert jnp.allclose(loss, ref_loss, rtol=1e-4, atol=1e-5), (
        float(loss), float(ref_loss))

    # Case 2: lane-aligned width (exercises the masked-roll halo path).
    pred2 = jax.random.uniform(k3, (2, 3, 8, 128), dtype=jnp.float32)
    gt2 = jax.random.uniform(k4, (2, 3, 8, 128), dtype=jnp.float32)
    loss2, corr2 = jax.jit(correlation_loss)(pred2, gt2)
    jax.block_until_ready((loss2, corr2))
    ref_loss2, ref_corr2 = _reference_loss(pred2, gt2)
    assert corr2.shape == (2, 1, 8, 128)
    assert jnp.allclose(corr2, ref_corr2, rtol=1e-4, atol=1e-4), float(
        jnp.max(jnp.abs(corr2 - ref_corr2)))
    assert jnp.allclose(loss2, ref_loss2, rtol=1e-4, atol=1e-5), (
        float(loss2), float(ref_loss2))

    print("KERNEL_OK")
</pallas_src>

<mosaic_0001>
module attributes {stable_mosaic.version = 11 : i64} {
  func.func @kernel(%arg0: i32, %arg1: memref<1x3x16x16xf32, #tpu.memory_space<vmem>>, %arg2: memref<1x3x16x16xf32, #tpu.memory_space<vmem>>, %arg3: memref<1x16x16xf32, #tpu.memory_space<vmem>>, %arg4: memref<1x8x128xf32, #tpu.memory_space<vmem>>, %arg5: memref<40x128xf32, #tpu.memory_space<vmem>>, %arg6: memref<40x128xf32, #tpu.memory_space<vmem>>, %arg7: memref<40x128xf32, #tpu.memory_space<vmem>>) attributes {dimension_semantics = [#tpu.dimension_semantics<parallel>], iteration_bounds = array<i64: 2>, scalar_prefetch = 0 : i64, scratch_operands = 3 : i64, tpu.core_type = #tpu.core_type<tc>, window_params = [{transform_indices = @transform_0, window_bounds = array<i64: 1, 3, 16, 16>}, {transform_indices = @transform_1, window_bounds = array<i64: 1, 3, 16, 16>}, {transform_indices = @transform_2, window_bounds = array<i64: 1, 16, 16>}, {transform_indices = @transform_3, window_bounds = array<i64: 1, 8, 128>}]} {
    %cst = arith.constant 0.000000e+00 : f32
    %0 = vector.broadcast %cst : f32 to vector<40x128xf32>
    %c0 = arith.constant 0 : index
    %c0_0 = arith.constant 0 : index
    %1 = vector.load %arg5[%c0, %c0_0] : memref<40x128xf32, #tpu.memory_space<vmem>>, vector<40x128xf32>
    tpu.vector_store %arg5[%c0, %c0_0], %0 {strides = array<i32>} : memref<40x128xf32, #tpu.memory_space<vmem>>, vector<40x128xf32>,
    %cst_1 = arith.constant 0.000000e+00 : f32
    %2 = vector.broadcast %cst_1 : f32 to vector<40x128xf32>
    %c0_2 = arith.constant 0 : index
    %c0_3 = arith.constant 0 : index
    %3 = vector.load %arg6[%c0_2, %c0_3] : memref<40x128xf32, #tpu.memory_space<vmem>>, vector<40x128xf32>
    tpu.vector_store %arg6[%c0_2, %c0_3], %2 {strides = array<i32>} : memref<40x128xf32, #tpu.memory_space<vmem>>, vector<40x128xf32>,
    %c0_4 = arith.constant 0 : index
    %c0_5 = arith.constant 0 : index
    %c0_6 = arith.constant 0 : index
    %c0_7 = arith.constant 0 : index
    %4 = vector.load %arg1[%c0_4, %c0_5, %c0_6, %c0_7] : memref<1x3x16x16xf32, #tpu.memory_space<vmem>>, vector<1x1x16x16xf32>
    %5 = vector.shape_cast %4 : vector<1x1x16x16xf32> to vector<16x16xf32>
    %cst_8 = arith.constant 0.256789058 : f32
    %6 = vector.broadcast %cst_8 : f32 to vector<16x16xf32>
    %7 = arith.mulf %5, %6 : vector<16x16xf32>
    %c0_9 = arith.constant 0 : index
    %c1 = arith.constant 1 : index
    %c0_10 = arith.constant 0 : index
    %c0_11 = arith.constant 0 : index
    %8 = vector.load %arg1[%c0_9, %c1, %c0_10, %c0_11] : memref<1x3x16x16xf32, #tpu.memory_space<vmem>>, vector<1x1x16x16xf32>
    %9 = vector.shape_cast %8 : vector<1x1x16x16xf32> to vector<16x16xf32>
    %cst_12 = arith.constant 0.504128933 : f32
    %10 = vector.broadcast %cst_12 : f32 to vector<16x16xf32>
    %11 = arith.mulf %9, %10 : vector<16x16xf32>
    %12 = arith.addf %7, %11 : vector<16x16xf32>
    %c0_13 = arith.constant 0 : index
    %c2 = arith.constant 2 : index
    %c0_14 = arith.constant 0 : index
    %c0_15 = arith.constant 0 : index
    %13 = vector.load %arg1[%c0_13, %c2, %c0_14, %c0_15] : memref<1x3x16x16xf32, #tpu.memory_space<vmem>>, vector<1x1x16x16xf32>
    %14 = vector.shape_cast %13 : vector<1x1x16x16xf32> to vector<16x16xf32>
    %cst_16 = arith.constant 0.0979062467 : f32
    %15 = vector.broadcast %cst_16 : f32 to vector<16x16xf32>
    %16 = arith.mulf %14, %15 : vector<16x16xf32>
    %17 = arith.addf %12, %16 : vector<16x16xf32>
    %c0_17 = arith.constant 0 : index
    %c0_18 = arith.constant 0 : index
    %c0_19 = arith.constant 0 : index
    %c0_20 = arith.constant 0 : index
    %18 = vector.load %arg2[%c0_17, %c0_18, %c0_19, %c0_20] : memref<1x3x16x16xf32, #tpu.memory_space<vmem>>, vector<1x1x16x16xf32>
    %19 = vector.shape_cast %18 : vector<1x1x16x16xf32> to vector<16x16xf32>
    %cst_21 = arith.constant 0.256789058 : f32
    %20 = vector.broadcast %cst_21 : f32 to vector<16x16xf32>
    %21 = arith.mulf %19, %20 : vector<16x16xf32>
    %c0_22 = arith.constant 0 : index
    %c1_23 = arith.constant 1 : index
    %c0_24 = arith.constant 0 : index
    %c0_25 = arith.constant 0 : index
    %22 = vector.load %arg2[%c0_22, %c1_23, %c0_24, %c0_25] : memref<1x3x16x16xf32, #tpu.memory_space<vmem>>, vector<1x1x16x16xf32>
    %23 = vector.shape_cast %22 : vector<1x1x16x16xf32> to vector<16x16xf32>
    %cst_26 = arith.constant 0.504128933 : f32
    %24 = vector.broadcast %cst_26 : f32 to vector<16x16xf32>
    %25 = arith.mulf %23, %24 : vector<16x16xf32>
    %26 = arith.addf %21, %25 : vector<16x16xf32>
    %c0_27 = arith.constant 0 : index
    %c2_28 = arith.constant 2 : index
    %c0_29 = arith.constant 0 : index
    %c0_30 = arith.constant 0 : index
    %27 = vector.load %arg2[%c0_27, %c2_28, %c0_29, %c0_30] : memref<1x3x16x16xf32, #tpu.memory_space<vmem>>, vector<1x1x16x16xf32>
    %28 = vector.shape_cast %27 : vector<1x1x16x16xf32> to vector<16x16xf32>
    %cst_31 = arith.constant 0.0979062467 : f32
    %29 = vector.broadcast %cst_31 : f32 to vector<16x16xf32>
    %30 = arith.mulf %28, %29 : vector<16x16xf32>
    %31 = arith.addf %26, %30 : vector<16x16xf32>
    %c8 = arith.constant 8 : index
    %c0_32 = arith.constant 0 : index
    %32 = vector.load %arg5[%c8, %c0_32] : memref<40x128xf32, #tpu.memory_space<vmem>>, vector<16x16xf32>
    tpu.vector_store %arg5[%c8, %c0_32], %17 {strides = array<i32>} : memref<40x128xf32, #tpu.memory_space<vmem>>, vector<16x16xf32>,
    %c8_33 = arith.constant 8 : index
    %c0_34 = arith.constant 0 : index
    %33 = vector.load %arg6[%c8_33, %c0_34] : memref<40x128xf32, #tpu.memory_space<vmem>>, vector<16x16xf32>
    tpu.vector_store %arg6[%c8_33, %c0_34], %31 {strides = array<i32>} : memref<40x128xf32, #tpu.memory_space<vmem>>, vector<16x16xf32>,
    %c6 = arith.constant 6 : index
    %c0_35 = arith.constant 0 : index
    %34 = vector.load %arg5[%c6, %c0_35] : memref<40x128xf32, #tpu.memory_space<vmem>>, vector<24x128xf32>
    %c7 = arith.constant 7 : index
    %c0_36 = arith.constant 0 : index
    %35 = vector.load %arg5[%c7, %c0_36] : memref<40x128xf32, #tpu.memory_space<vmem>>, vector<24x128xf32>
    %36 = arith.addf %34, %35 : vector<24x128xf32>
    %c8_37 = arith.constant 8 : index
    %c0_38 = arith.constant 0 : index
    %37 = vector.load %arg5[%c8_37, %c0_38] : memref<40x128xf32, #tpu.memory_space<vmem>>, vector<24x128xf32>
    %38 = arith.addf %36, %37 : vector<24x128xf32>
    %c9 = arith.constant 9 : index
    %c0_39 = arith.constant 0 : index
    %39 = vector.load %arg5[%c9, %c0_39] : memref<40x128xf32, #tpu.memory_space<vmem>>, vector<24x128xf32>
    %40 = arith.addf %38, %39 : vector<24x128xf32>
    %c10 = arith.constant 10 : index
    %c0_40 = arith.constant 0 : index
    %41 = vector.load %arg5[%c10, %c0_40] : memref<40x128xf32, #tpu.memory_space<vmem>>, vector<24x128xf32>
    %42 = arith.addf %40, %41 : vector<24x128xf32>
    %c127_i32 = arith.constant 127 : i32
    %43 = tpu.dynamic_rotate %42 by %c127_i32 dim 1 : vector<24x128xf32>, i32 -> vector<24x128xf32>
    %c1_i32 = arith.constant 1 : i32
    %44 = tpu.dynamic_rotate %42 by %c1_i32 dim 1 : vector<24x128xf32>, i32 -> vector<24x128xf32>
    %45 = arith.addf %42, %43 : vector<24x128xf32>
    %46 = arith.addf %45, %44 : vector<24x128xf32>
    %c126_i32 = arith.constant 126 : i32
    %47 = tpu.dynamic_rotate %42 by %c126_i32 dim 1 : vector<24x128xf32>, i32 -> vector<24x128xf32>
    %c2_i32 = arith.constant 2 : i32
    %48 = tpu.dynamic_rotate %42 by %c2_i32 dim 1 : vector<24x128xf32>, i32 -> vector<24x128xf32>
    %49 = arith.addf %46, %47 : vector<24x128xf32>
    %50 = arith.addf %49, %48 : vector<24x128xf32>
    %cst_41 = arith.constant 4.000000e-02 : f32
    %51 = vector.broadcast %cst_41 : f32 to vector<24x128xf32>
    %52 = arith.mulf %50, %51 : vector<24x128xf32>
    %c6_42 = arith.constant 6 : index
    %c0_43 = arith.constant 0 : index
    %53 = vector.load %arg6[%c6_42, %c0_43] : memref<40x128xf32, #tpu.memory_space<vmem>>, vector<24x128xf32>
    %c7_44 = arith.constant 7 : index
    %c0_45 = arith.constant 0 : index
    %54 = vector.load %arg6[%c7_44, %c0_45] : memref<40x128xf32, #tpu.memory_space<vmem>>, vector<24x128xf32>
    %55 = arith.addf %53, %54 : vector<24x128xf32>
    %c8_46 = arith.constant 8 : index
    %c0_47 = arith.constant 0 : index
    %56 = vector.load %arg6[%c8_46, %c0_47] : memref<40x128xf32, #tpu.memory_space<vmem>>, vector<24x128xf32>
    %57 = arith.addf %55, %56 : vector<24x128xf32>
    %c9_48 = arith.constant 9 : index
    %c0_49 = arith.constant 0 : index
    %58 = vector.load %arg6[%c9_48, %c0_49] : memref<40x128xf32, #tpu.memory_space<vmem>>, vector<24x128xf32>
    %59 = arith.addf %57, %58 : vector<24x128xf32>
    %c10_50 = arith.constant 10 : index
    %c0_51 = arith.constant 0 : index
    %60 = vector.load %arg6[%c10_50, %c0_51] : memref<40x128xf32, #tpu.memory_space<vmem>>, vector<24x128xf32>
    %61 = arith.addf %59, %60 : vector<24x128xf32>
    %c127_i32_52 = arith.constant 127 : i32
    %62 = tpu.dynamic_rotate %61 by %c127_i32_52 dim 1 : vector<24x128xf32>, i32 -> vector<24x128xf32>
    %c1_i32_53 = arith.constant 1 : i32
    %63 = tpu.dynamic_rotate %61 by %c1_i32_53 dim 1 : vector<24x128xf32>, i32 -> vector<24x128xf32>
    %64 = arith.addf %61, %62 : vector<24x128xf32>
    %65 = arith.addf %64, %63 : vector<24x128xf32>
    %c126_i32_54 = arith.constant 126 : i32
    %66 = tpu.dynamic_rotate %61 by %c126_i32_54 dim 1 : vector<24x128xf32>, i32 -> vector<24x128xf32>
    %c2_i32_55 = arith.constant 2 : i32
    %67 = tpu.dynamic_rotate %61 by %c2_i32_55 dim 1 : vector<24x128xf32>, i32 -> vector<24x128xf32>
    %68 = arith.addf %65, %66 : vector<24x128xf32>
    %69 = arith.addf %68, %67 : vector<24x128xf32>
    %cst_56 = arith.constant 4.000000e-02 : f32
    %70 = vector.broadcast %cst_56 : f32 to vector<24x128xf32>
    %71 = arith.mulf %69, %70 : vector<24x128xf32>
    %c0_57 = arith.constant 0 : index
    %c0_58 = arith.constant 0 : index
    %72 = vector.load %arg5[%c0_57, %c0_58] : memref<40x128xf32, #tpu.memory_space<vmem>>, vector<40x128xf32>
    %c0_59 = arith.constant 0 : index
    %c0_60 = arith.constant 0 : index
    %73 = vector.load %arg6[%c0_59, %c0_60] : memref<40x128xf32, #tpu.memory_space<vmem>>, vector<40x128xf32>
    %74 = arith.mulf %72, %73 : vector<40x128xf32>
    %c0_61 = arith.constant 0 : index
    %c0_62 = arith.constant 0 : index
    %75 = vector.load %arg7[%c0_61, %c0_62] : memref<40x128xf32, #tpu.memory_space<vmem>>, vector<40x128xf32>
    tpu.vector_store %arg7[%c0_61, %c0_62], %74 {strides = array<i32>} : memref<40x128xf32, #tpu.memory_space<vmem>>, vector<40x128xf32>,
    %c6_63 = arith.constant 6 : index
    %c0_64 = arith.constant 0 : index
    %76 = vector.load %arg7[%c6_63, %c0_64] : memref<40x128xf32, #tpu.memory_space<vmem>>, vector<24x128xf32>
    %c7_65 = arith.constant 7 : index
    %c0_66 = arith.constant 0 : index
    %77 = vector.load %arg7[%c7_65, %c0_66] : memref<40x128xf32, #tpu.memory_space<vmem>>, vector<24x128xf32>
    %78 = arith.addf %76, %77 : vector<24x128xf32>
    %c8_67 = arith.constant 8 : index
    %c0_68 = arith.constant 0 : index
    %79 = vector.load %arg7[%c8_67, %c0_68] : memref<40x128xf32, #tpu.memory_space<vmem>>, vector<24x128xf32>
    %80 = arith.addf %78, %79 : vector<24x128xf32>
    %c9_69 = arith.constant 9 : index
    %c0_70 = arith.constant 0 : index
    %81 = vector.load %arg7[%c9_69, %c0_70] : memref<40x128xf32, #tpu.memory_space<vmem>>, vector<24x128xf32>
    %82 = arith.addf %80, %81 : vector<24x128xf32>
    %c10_71 = arith.constant 10 : index
    %c0_72 = arith.constant 0 : index
    %83 = vector.load %arg7[%c10_71, %c0_72] : memref<40x128xf32, #tpu.memory_space<vmem>>, vector<24x128xf32>
    %84 = arith.addf %82, %83 : vector<24x128xf32>
    %c127_i32_73 = arith.constant 127 : i32
    %85 = tpu.dynamic_rotate %84 by %c127_i32_73 dim 1 : vector<24x128xf32>, i32 -> vector<24x128xf32>
    %c1_i32_74 = arith.constant 1 : i32
    %86 = tpu.dynamic_rotate %84 by %c1_i32_74 dim 1 : vector<24x128xf32>, i32 -> vector<24x128xf32>
    %87 = arith.addf %84, %85 : vector<24x128xf32>
    %88 = arith.addf %87, %86 : vector<24x128xf32>
    %c126_i32_75 = arith.constant 126 : i32
    %89 = tpu.dynamic_rotate %84 by %c126_i32_75 dim 1 : vector<24x128xf32>, i32 -> vector<24x128xf32>
    %c2_i32_76 = arith.constant 2 : i32
    %90 = tpu.dynamic_rotate %84 by %c2_i32_76 dim 1 : vector<24x128xf32>, i32 -> vector<24x128xf32>
    %91 = arith.addf %88, %89 : vector<24x128xf32>
    %92 = arith.addf %91, %90 : vector<24x128xf32>
    %cst_77 = arith.constant 4.000000e-02 : f32
    %93 = vector.broadcast %cst_77 : f32 to vector<24x128xf32>
    %94 = arith.mulf %92, %93 : vector<24x128xf32>
    %95 = arith.mulf %52, %71 : vector<24x128xf32>
    %96 = arith.subf %94, %95 : vector<24x128xf32>
    %c0_78 = arith.constant 0 : index
    %c0_79 = arith.constant 0 : index
    %97 = vector.load %arg5[%c0_78, %c0_79] : memref<40x128xf32, #tpu.memory_space<vmem>>, vector<40x128xf32>
    %c0_80 = arith.constant 0 : index
    %c0_81 = arith.constant 0 : index
    %98 = vector.load %arg5[%c0_80, %c0_81] : memref<40x128xf32, #tpu.memory_space<vmem>>, vector<40x128xf32>
    %99 = arith.mulf %97, %98 : vector<40x128xf32>
    %c0_82 = arith.constant 0 : index
    %c0_83 = arith.constant 0 : index
    %100 = vector.load %arg7[%c0_82, %c0_83] : memref<40x128xf32, #tpu.memory_space<vmem>>, vector<40x128xf32>
    tpu.vector_store %arg7[%c0_82, %c0_83], %99 {strides = array<i32>} : memref<40x128xf32, #tpu.memory_space<vmem>>, vector<40x128xf32>,
    %c6_84 = arith.constant 6 : index
    %c0_85 = arith.constant 0 : index
    %101 = vector.load %arg7[%c6_84, %c0_85] : memref<40x128xf32, #tpu.memory_space<vmem>>, vector<24x128xf32>
    %c7_86 = arith.constant 7 : index
    %c0_87 = arith.constant 0 : index
    %102 = vector.load %arg7[%c7_86, %c0_87] : memref<40x128xf32, #tpu.memory_space<vmem>>, vector<24x128xf32>
    %103 = arith.addf %101, %102 : vector<24x128xf32>
    %c8_88 = arith.constant 8 : index
    %c0_89 = arith.constant 0 : index
    %104 = vector.load %arg7[%c8_88, %c0_89] : memref<40x128xf32, #tpu.memory_space<vmem>>, vector<24x128xf32>
    %105 = arith.addf %103, %104 : vector<24x128xf32>
    %c9_90 = arith.constant 9 : index
    %c0_91 = arith.constant 0 : index
    %106 = vector.load %arg7[%c9_90, %c0_91] : memref<40x128xf32, #tpu.memory_space<vmem>>, vector<24x128xf32>
    %107 = arith.addf %105, %106 : vector<24x128xf32>
    %c10_92 = arith.constant 10 : index
    %c0_93 = arith.constant 0 : index
    %108 = vector.load %arg7[%c10_92, %c0_93] : memref<40x128xf32, #tpu.memory_space<vmem>>, vector<24x128xf32>
    %109 = arith.addf %107, %108 : vector<24x128xf32>
    %c127_i32_94 = arith.constant 127 : i32
    %110 = tpu.dynamic_rotate %109 by %c127_i32_94 dim 1 : vector<24x128xf32>, i32 -> vector<24x128xf32>
    %c1_i32_95 = arith.constant 1 : i32
    %111 = tpu.dynamic_rotate %109 by %c1_i32_95 dim 1 : vector<24x128xf32>, i32 -> vector<24x128xf32>
    %112 = arith.addf %109, %110 : vector<24x128xf32>
    %113 = arith.addf %112, %111 : vector<24x128xf32>
    %c126_i32_96 = arith.constant 126 : i32
    %114 = tpu.dynamic_rotate %109 by %c126_i32_96 dim 1 : vector<24x128xf32>, i32 -> vector<24x128xf32>
    %c2_i32_97 = arith.constant 2 : i32
    %115 = tpu.dynamic_rotate %109 by %c2_i32_97 dim 1 : vector<24x128xf32>, i32 -> vector<24x128xf32>
    %116 = arith.addf %113, %114 : vector<24x128xf32>
    %117 = arith.addf %116, %115 : vector<24x128xf32>
    %cst_98 = arith.constant 4.000000e-02 : f32
    %118 = vector.broadcast %cst_98 : f32 to vector<24x128xf32>
    %119 = arith.mulf %117, %118 : vector<24x128xf32>
    %120 = arith.mulf %52, %52 : vector<24x128xf32>
    %121 = arith.subf %119, %120 : vector<24x128xf32>
    %c0_99 = arith.constant 0 : index
    %c0_100 = arith.constant 0 : index
    %122 = vector.load %arg6[%c0_99, %c0_100] : memref<40x128xf32, #tpu.memory_space<vmem>>, vector<40x128xf32>
    %c0_101 = arith.constant 0 : index
    %c0_102 = arith.constant 0 : index
    %123 = vector.load %arg6[%c0_101, %c0_102] : memref<40x128xf32, #tpu.memory_space<vmem>>, vector<40x128xf32>
    %124 = arith.mulf %122, %123 : vector<40x128xf32>
    %c0_103 = arith.constant 0 : index
    %c0_104 = arith.constant 0 : index
    %125 = vector.load %arg7[%c0_103, %c0_104] : memref<40x128xf32, #tpu.memory_space<vmem>>, vector<40x128xf32>
    tpu.vector_store %arg7[%c0_103, %c0_104], %124 {strides = array<i32>} : memref<40x128xf32, #tpu.memory_space<vmem>>, vector<40x128xf32>,
    %c6_105 = arith.constant 6 : index
    %c0_106 = arith.constant 0 : index
    %126 = vector.load %arg7[%c6_105, %c0_106] : memref<40x128xf32, #tpu.memory_space<vmem>>, vector<24x128xf32>
    %c7_107 = arith.constant 7 : index
    %c0_108 = arith.constant 0 : index
    %127 = vector.load %arg7[%c7_107, %c0_108] : memref<40x128xf32, #tpu.memory_space<vmem>>, vector<24x128xf32>
    %128 = arith.addf %126, %127 : vector<24x128xf32>
    %c8_109 = arith.constant 8 : index
    %c0_110 = arith.constant 0 : index
    %129 = vector.load %arg7[%c8_109, %c0_110] : memref<40x128xf32, #tpu.memory_space<vmem>>, vector<24x128xf32>
    %130 = arith.addf %128, %129 : vector<24x128xf32>
    %c9_111 = arith.constant 9 : index
    %c0_112 = arith.constant 0 : index
    %131 = vector.load %arg7[%c9_111, %c0_112] : memref<40x128xf32, #tpu.memory_space<vmem>>, vector<24x128xf32>
    %132 = arith.addf %130, %131 : vector<24x128xf32>
    %c10_113 = arith.constant 10 : index
    %c0_114 = arith.constant 0 : index
    %133 = vector.load %arg7[%c10_113, %c0_114] : memref<40x128xf32, #tpu.memory_space<vmem>>, vector<24x128xf32>
    %134 = arith.addf %132, %133 : vector<24x128xf32>
    %c127_i32_115 = arith.constant 127 : i32
    %135 = tpu.dynamic_rotate %134 by %c127_i32_115 dim 1 : vector<24x128xf32>, i32 -> vector<24x128xf32>
    %c1_i32_116 = arith.constant 1 : i32
    %136 = tpu.dynamic_rotate %134 by %c1_i32_116 dim 1 : vector<24x128xf32>, i32 -> vector<24x128xf32>
    %137 = arith.addf %134, %135 : vector<24x128xf32>
    %138 = arith.addf %137, %136 : vector<24x128xf32>
    %c126_i32_117 = arith.constant 126 : i32
    %139 = tpu.dynamic_rotate %134 by %c126_i32_117 dim 1 : vector<24x128xf32>, i32 -> vector<24x128xf32>
    %c2_i32_118 = arith.constant 2 : i32
    %140 = tpu.dynamic_rotate %134 by %c2_i32_118 dim 1 : vector<24x128xf32>, i32 -> vector<24x128xf32>
    %141 = arith.addf %138, %139 : vector<24x128xf32>
    %142 = arith.addf %141, %140 : vector<24x128xf32>
    %cst_119 = arith.constant 4.000000e-02 : f32
    %143 = vector.broadcast %cst_119 : f32 to vector<24x128xf32>
    %144 = arith.mulf %142, %143 : vector<24x128xf32>
    %145 = arith.mulf %71, %71 : vector<24x128xf32>
    %146 = arith.subf %144, %145 : vector<24x128xf32>
    %147 = arith.mulf %121, %146 : vector<24x128xf32>
    %cst_120 = arith.constant 9.99999974E-5 : f32
    %148 = vector.broadcast %cst_120 : f32 to vector<24x128xf32>
    %149 = arith.addf %147, %148 : vector<24x128xf32>
    %150 = math.rsqrt %149 : vector<24x128xf32>
    %151 = arith.mulf %96, %150 : vector<24x128xf32>
    %152 = math.absf %151 : vector<24x128xf32>
    %153 = vector.extract_strided_slice %152 {offsets = [0, 0], sizes = [16, 16], strides = [1, 1]} : vector<24x128xf32> to vector<16x16xf32>
    %c0_121 = arith.constant 0 : index
    %c0_122 = arith.constant 0 : index
    %c0_123 = arith.constant 0 : index
    %154 = vector.load %arg3[%c0_121, %c0_122, %c0_123] : memref<1x16x16xf32, #tpu.memory_space<vmem>>, vector<1x16x16xf32>
    %155 = vector.shape_cast %154 : vector<1x16x16xf32> to vector<16x16xf32>
    %156 = vector.shape_cast %153 : vector<16x16xf32> to vector<1x16x16xf32>
    tpu.vector_store %arg3[%c0_121, %c0_122, %c0_123], %156 {strides = array<i32>} : memref<1x16x16xf32, #tpu.memory_space<vmem>>, vector<1x16x16xf32>,
    %157 = vector.shape_cast %153 : vector<16x16xf32> to vector<1x16x16xf32>
    %cst_124 = arith.constant dense<0.000000e+00> : vector<1xf32>
    %158 = vector.multi_reduction <add>, %157, %cst_124 [1, 2] : vector<1x16x16xf32> to vector<1xf32>
    %159 = vector.shape_cast %158 : vector<1xf32> to vector<1x1x1xf32>
    %160 = vector.extract %159[0, 0, 0] : f32 from vector<1x1x1xf32>
    %cst_125 = arith.constant 0.000000e+00 : f32
    %161 = arith.addf %cst_125, %160 : f32
    %162 = vector.broadcast %161 : f32 to vector<1x8x128xf32>
    %c0_126 = arith.constant 0 : index
    %c0_127 = arith.constant 0 : index
    %c0_128 = arith.constant 0 : index
    %163 = vector.load %arg4[%c0_126, %c0_127, %c0_128] : memref<1x8x128xf32, #tpu.memory_space<vmem>>, vector<1x8x128xf32>
    tpu.vector_store %arg4[%c0_126, %c0_127, %c0_128], %162 {strides = array<i32>} : memref<1x8x128xf32, #tpu.memory_space<vmem>>, vector<1x8x128xf32>,
    return
  }
  func.func @transform_0(%arg0: i32) -> (i32, i32, i32, i32) {
    %c0_i32 = arith.constant 0 : i32
    %c0_i32_0 = arith.constant 0 : i32
    %c0_i32_1 = arith.constant 0 : i32
    %c0_i32_2 = arith.constant 0 : i32
    return %arg0, %c0_i32, %c0_i32_0, %c0_i32_1 : i32, i32, i32, i32
  }
  func.func @transform_1(%arg0: i32) -> (i32, i32, i32, i32) {
    %c0_i32 = arith.constant 0 : i32
    %c0_i32_0 = arith.constant 0 : i32
    %c0_i32_1 = arith.constant 0 : i32
    %c0_i32_2 = arith.constant 0 : i32
    return %arg0, %c0_i32, %c0_i32_0, %c0_i32_1 : i32, i32, i32, i32
  }
  func.func @transform_2(%arg0: i32) -> (i32, i32, i32) {
    %c0_i32 = arith.constant 0 : i32
    %c0_i32_0 = arith.constant 0 : i32
    %c0_i32_1 = arith.constant 0 : i32
    return %arg0, %c0_i32, %c0_i32_0 : i32, i32, i32
  }
  func.func @transform_3(%arg0: i32) -> (i32, i32, i32) {
    %c0_i32 = arith.constant 0 : i32
    %c0_i32_0 = arith.constant 0 : i32
    %c0_i32_1 = arith.constant 0 : i32
    return %arg0, %c0_i32, %c0_i32_0 : i32, i32, i32
  }
}

</mosaic_0001>

<llo_original>
// kernel: correlation_loss.1
$region0: #{correlation_loss.1}
  #allocation0 [shape = 'u32[]', space=smem, size = 0x4, offset = 0x4, fixed_abs, tag = 'smem constant byte address 0x4 - core index']
  #allocation1 [shape = 'u32[144,128]{1,0:T(1,128)}', space=vmem, size = 0x12000, scoped, tag = 'internal scratch']
  #allocation2 [shape = 'f32[40,128]{1,0:T(8,128)}', space=vmem, size = 0x5000, scoped, tag = 'scratch operand']
  #allocation3 [shape = 'f32[40,128]{1,0:T(8,128)}', space=vmem, size = 0x5000, scoped, tag = 'scratch operand']
  #allocation4 [shape = 'f32[40,128]{1,0:T(8,128)}', space=vmem, size = 0x5000, scoped, tag = 'scratch operand']
  %s0 = inlined_call_operand.hbm [shape: f32[2,3,16,16], index: 0, kind: input, shape index: {}]
  %s1 = inlined_call_operand.hbm [shape: f32[2,3,16,16], index: 1, kind: input, shape index: {}]
  %s2 = inlined_call_operand.hbm [shape: f32[2,16,16], index: 2, kind: output, shape index: {0}]
  %s3 = inlined_call_operand.vmem [shape: f32[2,8,128], index: 3, kind: output, shape index: {1}]
  %4 = xla_tuple %s2, %s3
  %s5 = sld [smem:[#allocation0]]
  $region57: #{correlation_loss.1} parent=0
    _
  %s7 = ssub.s32 1, %s5
  %s8 = scalar_select 0, %s7, %s5
  $region1: #{correlation_loss.1} parent=0
    #allocation5 [shape = 'u8[49152]{0}', space=vmem, size = 0xc000, scoped, tag = 'input window, operand 0']
    #allocation6 [shape = 's32[2]{0}', space=sflag, size = 0x8, scoped, tag = 'scoped memory for correlation_loss.1']
    #allocation7 [shape = 's32[2]{0}', space=sflag, size = 0x8, scoped, tag = 'scoped memory for correlation_loss.1']
    #allocation8 [shape = 'u8[49152]{0}', space=vmem, size = 0xc000, scoped, tag = 'input window, operand 1']
    #allocation9 [shape = 's32[2]{0}', space=sflag, size = 0x8, scoped, tag = 'scoped memory for correlation_loss.1']
    #allocation10 [shape = 'u8[16384]{0}', space=vmem, size = 0x4000, scoped, tag = 'output window, operand 0']
    %9 = vsyncpa [#allocation6], 0
    %s10 = scalar_lea.sflag [#allocation6], 1
    %11 = vsyncpa %s10, 0
    %12 = vsyncpa [#allocation9], 0
    %s13 = scalar_lea.sflag [#allocation9], 1
    %14 = vsyncpa %s13, 0
    %15 = vsyncpa [#allocation7], 0
    %s16 = scalar_lea.sflag [#allocation7], 1
    %17 = vsyncpa %s16, 0
    loop: start=0, step=1, limit=4
    $region2: #{correlation_loss.1} parent=1 // loop_pre_header
      _
    $region3: #{correlation_loss.1} parent=1 // loop_header
      %s19 = sphi 0, %s23
      %p20 = scmp.ge.s32.totalorder %s19, 4
      %s29 = sphi 0, %s31
      %s32 = sphi 0, %s29
      %s33 = sphi 0, %s32
      %s49 = sphi 0, %s33
      %s55 = sphi 0, %s57
      %s58 = sphi 0, %s55
      %s59 = sphi 0, %s58
      %s75 = sphi 0, %s59
      %s81 = sphi 0, %s83
      %s84 = sphi 0, %s81
      %s85 = sphi 0, %s84
      %s101 = sphi 0, %s85
      %s107 = sphi 0, %s109
      %s110 = sphi 0, %s107
      %s111 = sphi 0, %s110
      %s127 = sphi 0, %s111
    $region4: #{correlation_loss.1} parent=1 // loop_header_branch
      %22 = sbr.rel (%p20) target = $region8
    $region5: #{correlation_loss.1} parent=1 // loop_body
      %s24 = ssub.s32 %s19, 1
      %s25 = ssub.s32 %s19, 2
      %s26 = sadd.s32 %s19, 1
      %s27 = ssub.s32 %s19, %s26
      %p28 = scmp.eq.s32.totalorder %s27, 0
      %s30 = sadd.s32 %s29, 1
      %s31 = scalar_select %p28, %s29, %s30
      %p34 = pneg %p28
      %p35 = scmp.eq.s32.totalorder %s19, 1
      %p36 = por %p34, %p35
      %p37 = scmp.ne.s32.totalorder %s29, %s32
      %p38 = scmp.eq.s32.totalorder %s19, 0
      %p39 = por %p37, %p38
      %p40 = scmp.ne.s32.totalorder %s29, %s32
      %p41 = scmp.eq.s32.totalorder %s24, 1
      %p42 = por %p40, %p41
      %p43 = scmp.ne.s32.totalorder %s32, %s33
      %p44 = scmp.eq.s32.totalorder %s24, 0
      %p45 = por %p43, %p44
      %p46 = scmp.ne.s32.totalorder %s32, %s33
      %p47 = scmp.eq.s32.totalorder %s25, 1
      %p48 = por %p46, %p47
      %p50 = scmp.ne.s32.totalorder %s33, %s49
      %p51 = scmp.eq.s32.totalorder %s25, 0
      %p52 = por %p50, %p51
      %s53 = ssub.s32 %s19, %s26
      %p54 = scmp.eq.s32.totalorder %s53, 0
      %s56 = sadd.s32 %s55, 1
      %s57 = scalar_select %p54, %s55, %s56
      %p60 = pneg %p54
      %p61 = scmp.eq.s32.totalorder %s19, 1
      %p62 = por %p60, %p61
      %p63 = scmp.ne.s32.totalorder %s55, %s58
      %p64 = scmp.eq.s32.totalorder %s19, 0
      %p65 = por %p63, %p64
      %p66 = scmp.ne.s32.totalorder %s55, %s58
      %p67 = scmp.eq.s32.totalorder %s24, 1
      %p68 = por %p66, %p67
      %p69 = scmp.ne.s32.totalorder %s58, %s59
      %p70 = scmp.eq.s32.totalorder %s24, 0
      %p71 = por %p69, %p70
      %p72 = scmp.ne.s32.totalorder %s58, %s59
      %p73 = scmp.eq.s32.totalorder %s25, 1
      %p74 = por %p72, %p73
      %p76 = scmp.ne.s32.totalorder %s59, %s75
      %p77 = scmp.eq.s32.totalorder %s25, 0
      %p78 = por %p76, %p77
      %s79 = ssub.s32 %s19, %s26
      %p80 = scmp.eq.s32.totalorder %s79, 0
      %s82 = sadd.s32 %s81, 1
      %s83 = scalar_select %p80, %s81, %s82
      %p86 = pneg %p80
      %p87 = scmp.eq.s32.totalorder %s19, 1
      %p88 = por %p86, %p87
      %p89 = scmp.ne.s32.totalorder %s81, %s84
      %p90 = scmp.eq.s32.totalorder %s19, 0
      %p91 = por %p89, %p90
      %p92 = scmp.ne.s32.totalorder %s81, %s84
      %p93 = scmp.eq.s32.totalorder %s24, 1
      %p94 = por %p92, %p93
      %p95 = scmp.ne.s32.totalorder %s84, %s85
      %p96 = scmp.eq.s32.totalorder %s24, 0
      %p97 = por %p95, %p96
      %p98 = scmp.ne.s32.totalorder %s84, %s85
      %p99 = scmp.eq.s32.totalorder %s25, 1
      %p100 = por %p98, %p99
      %p102 = scmp.ne.s32.totalorder %s85, %s101
      %p103 = scmp.eq.s32.totalorder %s25, 0
      %p104 = por %p102, %p103
      %s105 = ssub.s32 %s19, %s26
      %p106 = scmp.eq.s32.totalorder %s105, 0
      %s108 = sadd.s32 %s107, 1
      %s109 = scalar_select %p106, %s107, %s108
      %p112 = pneg %p106
      %p113 = scmp.eq.s32.totalorder %s19, 1
      %p114 = por %p112, %p113
      %p115 = scmp.ne.s32.totalorder %s107, %s110
      %p116 = scmp.eq.s32.totalorder %s19, 0
      %p117 = por %p115, %p116
      %p118 = scmp.ne.s32.totalorder %s107, %s110
      %p119 = scmp.eq.s32.totalorder %s24, 1
      %p120 = por %p118, %p119
      %p121 = scmp.ne.s32.totalorder %s110, %s111
      %p122 = scmp.eq.s32.totalorder %s24, 0
      %p123 = por %p121, %p122
      %p124 = scmp.ne.s32.totalorder %s110, %s111
      %p125 = scmp.eq.s32.totalorder %s25, 1
      %p126 = por %p124, %p125
      %p128 = scmp.ne.s32.totalorder %s111, %s127
      %p129 = scmp.eq.s32.totalorder %s25, 0
      %p130 = por %p128, %p129
      %p131 = scmp.le.s32.totalorder 1, %s19
      %p132 = scmp.lt.s32.totalorder %s19, 3
      %p133 = pnand %p131, %p132
      %p134 = pneg %p133
      // Predicated region
      $region9: #{correlation_loss.1} parent=5 // pred_check
        _
      $region10: #{correlation_loss.1} parent=5 // pred_check_branch
        %136 = sbr.rel (%p133) target = $region12
      $region11: #{correlation_loss.1} parent=5 // pred_region
        %s137 = ssub.s32 %s19, 1
      $region12: #{correlation_loss.1} parent=5 // pred_fallthru
        _
      %p138 = scmp.lt.s32.totalorder %s19, 2
      // Predicated region
      $region13: #{correlation_loss.1} parent=5 // pred_check
        %p139 = pneg %p138
      $region14: #{correlation_loss.1} parent=5 // pred_check_branch
        %141 = sbr.rel (%p139) target = $region16
      $region15: #{correlation_loss.1} parent=5 // pred_region
        // Predicated region
        $region17: #{correlation_loss.1} parent=15 // pred_check
          %p142 = pneg %p39
        $region18: #{correlation_loss.1} parent=15 // pred_check_branch
          %144 = sbr.rel (%p142) target = $region20
        $region19: #{correlation_loss.1} parent=15 // pred_region
          %s145 = sand.u32 %s29, 1
          %s146 = scalar_lea.sflag [#allocation6], %s145
          %s147 = sand.u32 %s29, 1
          %s148 = smul.addr %s147, 48
          %s149 = scalar_lea.vmem [#allocation5], %s148
          %s151 = ssub.s32 768, 768
          %152 = vsyncadd %s146, %s151
          %s153 = smul.addr %s19, 6
          %s154 = smul.addr %s153, 128
          %s155 = scalar_lea.hbm %s0, %s154
          %s156 = sshll.u32 %s149, 4
          %s157 = int_to_ptr.vmem [resolvable:$true] %s156
          %162 = dma.hbm_to_vmem [thread:$0]  %s155, 768, %s157, %s146, 128, 128, 8
        $region20: #{correlation_loss.1} parent=15 // pred_fallthru
          _
        // Predicated region
        $region21: #{correlation_loss.1} parent=15 // pred_check
          %p163 = pneg %p65
        $region22: #{correlation_loss.1} parent=15 // pred_check_branch
          %165 = sbr.rel (%p163) target = $region24
        $region23: #{correlation_loss.1} parent=15 // pred_region
          %s166 = sand.u32 %s55, 1
          %s167 = scalar_lea.sflag [#allocation9], %s166
          %s168 = sand.u32 %s55, 1
          %s169 = smul.addr %s168, 48
          %s170 = scalar_lea.vmem [#allocation8], %s169
          %s172 = ssub.s32 768, 768
          %173 = vsyncadd %s167, %s172
          %s174 = smul.addr %s19, 6
          %s175 = smul.addr %s174, 128
          %s176 = scalar_lea.hbm %s1, %s175
          %s177 = sshll.u32 %s170, 4
          %s178 = int_to_ptr.vmem [resolvable:$true] %s177
          %183 = dma.hbm_to_vmem [thread:$0]  %s176, 768, %s178, %s167, 128, 128, 8
        $region24: #{correlation_loss.1} parent=15 // pred_fallthru
          _
      $region16: #{correlation_loss.1} parent=5 // pred_fallthru
        _
      %p184 = scmp.le.s32.totalorder 1, %s19
      %p185 = scmp.lt.s32.totalorder %s19, 3
      %p186 = pnand %p184, %p185
      %p187 = pneg %p186
      // Predicated region
      $region25: #{correlation_loss.1} parent=5 // pred_check
        _
      $region26: #{correlation_loss.1} parent=5 // pred_check_branch
        %189 = sbr.rel (%p186) target = $region28
      $region27: #{correlation_loss.1} parent=5 // pred_region
        %s190 = ssub.s32 %s19, 1
        %s191 = sand.u32 %s32, 1
        %s192 = scalar_lea.sflag [#allocation6], %s191
        %s193 = sand.u32 %s32, 1
        %s194 = smul.addr %s193, 48
        %s195 = scalar_lea.vmem [#allocation5], %s194
        // Predicated region
        $region29: #{correlation_loss.1} parent=27 // pred_check
          %p196 = pneg %p45
        $region30: #{correlation_loss.1} parent=27 // pred_check_branch
          %198 = sbr.rel (%p196) target = $region32
        $region31: #{correlation_loss.1} parent=27 // pred_region
          %199 = dma.done %s192, 768
        $region32: #{correlation_loss.1} parent=27 // pred_fallthru
          _
        %s200 = sand.u32 %s58, 1
        %s201 = scalar_lea.sflag [#allocation9], %s200
        %s202 = sand.u32 %s58, 1
        %s203 = smul.addr %s202, 48
        %s204 = scalar_lea.vmem [#allocation8], %s203
        // Predicated region
        $region33: #{correlation_loss.1} parent=27 // pred_check
          %p205 = pneg %p71
        $region34: #{correlation_loss.1} parent=27 // pred_check_branch
          %207 = sbr.rel (%p205) target = $region36
        $region35: #{correlation_loss.1} parent=27 // pred_region
          %208 = dma.done %s201, 768
        $region36: #{correlation_loss.1} parent=27 // pred_fallthru
          _
        %s209 = sand.u32 %s32, 1
        %s210 = scalar_lea.sflag [#allocation6], %s209
        %s211 = sand.u32 %s32, 1
        %s212 = smul.addr %s211, 48
        %s213 = scalar_lea.vmem [#allocation5], %s212
        %p214 = pneg %p45
        %p215 = pneg %p42
        %s216 = sand.u32 %s58, 1
        %s217 = scalar_lea.sflag [#allocation9], %s216
        %s218 = sand.u32 %s58, 1
        %s219 = smul.addr %s218, 48
        %s220 = scalar_lea.vmem [#allocation8], %s219
        %p221 = pneg %p71
        %p222 = pneg %p68
        %p223 = pneg %p97
        %p224 = pneg %p94
        %s225 = sand.u32 %s84, 1
        %s226 = scalar_lea.sflag [#allocation7], %s225
        %s227 = sand.u32 %s84, 1
        %s228 = smul.addr %s227, 16
        %s229 = scalar_lea.vmem [#allocation10], %s228
        %p230 = pneg %p123
        %p231 = pneg %p120
        %p232 = scmp.lt.s32.totalorder %s24, 1
        %s233 = scalar_select %p232, %s24, 1
        %s234 = smul.addr %s233, 8
        %s235 = scalar_lea.vmem %s3, %s234
        %p236 = scmp.lt.s32.totalorder %s24, 1
        %s237 = scalar_select %p236, %s24, 1
        %s238 = smul.addr %s237, 8
        %s239 = scalar_lea.vmem %s3, %s238
        %240 = vst [vmem:[#allocation2] sm:$0xff] 0.0
        %241 = vst [vmem:[#allocation2 + $0x8] sm:$0xff] 0.0
        %242 = vst [vmem:[#allocation2 + $0x10] sm:$0xff] 0.0
        %243 = vst [vmem:[#allocation2 + $0x18] sm:$0xff] 0.0
        %244 = vst [vmem:[#allocation2 + $0x20] sm:$0xff] 0.0
        %245 = vst [vmem:[#allocation3] sm:$0xff] 0.0
        %246 = vst [vmem:[#allocation3 + $0x8] sm:$0xff] 0.0
        %247 = vst [vmem:[#allocation3 + $0x10] sm:$0xff] 0.0
        %248 = vst [vmem:[#allocation3 + $0x18] sm:$0xff] 0.0
        %249 = vst [vmem:[#allocation3 + $0x20] sm:$0xff] 0.0
        %v250 = vld [vmem:[%s195] sm:$0xff]
        %v251 = vld [vmem:[%s195 + $0x8] sm:$0xff]
        %v252 = vmul.f32 %v250, 0.25678906
        %v253 = vmul.f32 %v251, 0.25678906
        %s254 = scalar_lea.vmem %s195, 16 [#allocation5]
        %v255 = vld [vmem:[%s254] sm:$0xff]
        %v256 = vld [vmem:[%s254 + $0x8] sm:$0xff]
        %v257 = vmul.f32 %v255, 0.50412893
        %v258 = vmul.f32 %v256, 0.50412893
        %v259 = vadd.f32 %v252, %v257
        %v260 = vadd.f32 %v253, %v258
        %s261 = scalar_lea.vmem %s195, 32 [#allocation5]
        %v262 = vld [vmem:[%s261] sm:$0xff]
        %v263 = vld [vmem:[%s261 + $0x8] sm:$0xff]
        %v264 = vmul.f32 %v262, 0.09790625
        %v265 = vmul.f32 %v263, 0.09790625
        %v266 = vadd.f32 %v259, %v264
        %v267 = vadd.f32 %v260, %v265
        %v268 = vld [vmem:[%s204] sm:$0xff]
        %v269 = vld [vmem:[%s204 + $0x8] sm:$0xff]
        %v270 = vmul.f32 %v268, 0.25678906
        %v271 = vmul.f32 %v269, 0.25678906
        %s272 = scalar_lea.vmem %s204, 16 [#allocation8]
        %v273 = vld [vmem:[%s272] sm:$0xff]
        %v274 = vld [vmem:[%s272 + $0x8] sm:$0xff]
        %v275 = vmul.f32 %v273, 0.50412893
        %v276 = vmul.f32 %v274, 0.50412893
        %v277 = vadd.f32 %v270, %v275
        %v278 = vadd.f32 %v271, %v276
        %s279 = scalar_lea.vmem %s204, 32 [#allocation8]
        %v280 = vld [vmem:[%s279] sm:$0xff]
        %v281 = vld [vmem:[%s279 + $0x8] sm:$0xff]
        %v282 = vmul.f32 %v280, 0.09790625
        %v283 = vmul.f32 %v281, 0.09790625
        %v284 = vadd.f32 %v277, %v282
        %v285 = vadd.f32 %v278, %v283
        %vm286 = vcmask 130048
        %287 = vst.msk [vmem:[#allocation2 + $0x8] sm:$0xff] %vm286, %v266
        %288 = vst.msk [vmem:[#allocation2 + $0x10] sm:$0xff] %vm286, %v267
        %289 = vst.msk [vmem:[#allocation3 + $0x8] sm:$0xff] %vm286, %v284
        %290 = vst.msk [vmem:[#allocation3 + $0x10] sm:$0xff] %vm286, %v285
        %v291 = vld [vmem:[#allocation2 + $0x6] sm:$0xff]
        %v292 = vld [vmem:[#allocation2 + $0xe] sm:$0xff]
        %v293 = vld [vmem:[#allocation2 + $0x7] sm:$0xff]
        %v294 = vld [vmem:[#allocation2 + $0xf] sm:$0xff]
        %v295 = vadd.f32 %v291, %v293
        %v296 = vadd.f32 %v292, %v294
        %v297 = vld [vmem:[#allocation2 + $0x8] sm:$0xff]
        %v298 = vld [vmem:[#allocation2 + $0x10] sm:$0xff]
        %v299 = vadd.f32 %v295, %v297
        %v300 = vadd.f32 %v296, %v298
        %v301 = vld [vmem:[#allocation2 + $0x9] sm:$0xff]
        %v302 = vld [vmem:[#allocation2 + $0x11] sm:$0xff]
        %v303 = vadd.f32 %v299, %v301
        %v304 = vadd.f32 %v300, %v302
        %v305 = vld [vmem:[#allocation2 + $0xa] sm:$0xff]
        %v306 = vld [vmem:[#allocation2 + $0x12] sm:$0xff]
        %v307 = vadd.f32 %v303, %v305
        %v308 = vadd.f32 %v304, %v306
        %309 = vrot.lane.b32.xlu0 %v307, 127
        %v310 = vpop.permute.xlu0 %309
        %311 = vrot.lane.b32.xlu0 %v308, 127
        %v312 = vpop.permute.xlu0 %311
        %313 = vrot.lane.b32.xlu0 %v307, 1
        %v314 = vpop.permute.xlu0 %313
        %315 = vrot.lane.b32.xlu0 %v308, 1
        %v316 = vpop.permute.xlu0 %315
        %v317 = vadd.f32 %v307, %v310
        %v318 = vadd.f32 %v308, %v312
        %v319 = vadd.f32 %v317, %v314
        %v320 = vadd.f32 %v318, %v316
        %321 = vrot.lane.b32.xlu0 %v307, 126
        %v322 = vpop.permute.xlu0 %321
        %323 = vrot.lane.b32.xlu0 %v308, 126
        %v324 = vpop.permute.xlu0 %323
        %325 = vrot.lane.b32.xlu0 %v307, 2
        %v326 = vpop.permute.xlu0 %325
        %327 = vrot.lane.b32.xlu0 %v308, 2
        %v328 = vpop.permute.xlu0 %327
        %v329 = vadd.f32 %v319, %v322
        %v330 = vadd.f32 %v320, %v324
        %v331 = vadd.f32 %v329, %v326
        %v332 = vadd.f32 %v330, %v328
        %v333 = vmul.f32 %v331, 0.04
        %v334 = vmul.f32 %v332, 0.04
        %v335 = vld [vmem:[#allocation3 + $0x6] sm:$0xff]
        %v336 = vld [vmem:[#allocation3 + $0xe] sm:$0xff]
        %v337 = vld [vmem:[#allocation3 + $0x7] sm:$0xff]
        %v338 = vld [vmem:[#allocation3 + $0xf] sm:$0xff]
        %v339 = vadd.f32 %v335, %v337
        %v340 = vadd.f32 %v336, %v338
        %v341 = vld [vmem:[#allocation3 + $0x8] sm:$0xff]
        %v342 = vld [vmem:[#allocation3 + $0x10] sm:$0xff]
        %v343 = vadd.f32 %v339, %v341
        %v344 = vadd.f32 %v340, %v342
        %v345 = vld [vmem:[#allocation3 + $0x9] sm:$0xff]
        %v346 = vld [vmem:[#allocation3 + $0x11] sm:$0xff]
        %v347 = vadd.f32 %v343, %v345
        %v348 = vadd.f32 %v344, %v346
        %v349 = vld [vmem:[#allocation3 + $0xa] sm:$0xff]
        %v350 = vld [vmem:[#allocation3 + $0x12] sm:$0xff]
        %v351 = vadd.f32 %v347, %v349
        %v352 = vadd.f32 %v348, %v350
        %353 = vrot.lane.b32.xlu0 %v351, 127
        %v354 = vpop.permute.xlu0 %353
        %355 = vrot.lane.b32.xlu0 %v352, 127
        %v356 = vpop.permute.xlu0 %355
        %357 = vrot.lane.b32.xlu0 %v351, 1
        %v358 = vpop.permute.xlu0 %357
        %359 = vrot.lane.b32.xlu0 %v352, 1
        %v360 = vpop.permute.xlu0 %359
        %v361 = vadd.f32 %v351, %v354
        %v362 = vadd.f32 %v352, %v356
        %v363 = vadd.f32 %v361, %v358
        %v364 = vadd.f32 %v362, %v360
        %365 = vrot.lane.b32.xlu0 %v351, 126
        %v366 = vpop.permute.xlu0 %365
        %367 = vrot.lane.b32.xlu0 %v352, 126
        %v368 = vpop.permute.xlu0 %367
        %369 = vrot.lane.b32.xlu0 %v351, 2
        %v370 = vpop.permute.xlu0 %369
        %371 = vrot.lane.b32.xlu0 %v352, 2
        %v372 = vpop.permute.xlu0 %371
        %v373 = vadd.f32 %v363, %v366
        %v374 = vadd.f32 %v364, %v368
        %v375 = vadd.f32 %v373, %v370
        %v376 = vadd.f32 %v374, %v372
        %v377 = vmul.f32 %v375, 0.04
        %v378 = vmul.f32 %v376, 0.04
        %v379 = vld [vmem:[#allocation2] sm:$0xff]
        %v380 = vld [vmem:[#allocation2 + $0x8] sm:$0xff]
        %v381 = vld [vmem:[#allocation2 + $0x10] sm:$0xff]
        %v382 = vld [vmem:[#allocation2 + $0x18] sm:$0xff]
        %v383 = vld [vmem:[#allocation2 + $0x20] sm:$0xff]
        %v384 = vld [vmem:[#allocation3] sm:$0xff]
        %v385 = vld [vmem:[#allocation3 + $0x8] sm:$0xff]
        %v386 = vld [vmem:[#allocation3 + $0x10] sm:$0xff]
        %v387 = vld [vmem:[#allocation3 + $0x18] sm:$0xff]
        %v388 = vld [vmem:[#allocation3 + $0x20] sm:$0xff]
        %v389 = vmul.f32 %v379, %v384
        %v390 = vmul.f32 %v380, %v385
        %v391 = vmul.f32 %v381, %v386
        %v392 = vmul.f32 %v382, %v387
        %v393 = vmul.f32 %v383, %v388
        %394 = vst [vmem:[#allocation4] sm:$0xff] %v389
        %395 = vst [vmem:[#allocation4 + $0x8] sm:$0xff] %v390
        %396 = vst [vmem:[#allocation4 + $0x10] sm:$0xff] %v391
        %397 = vst [vmem:[#allocation4 + $0x18] sm:$0xff] %v392
        %398 = vst [vmem:[#allocation4 + $0x20] sm:$0xff] %v393
        %v399 = vld [vmem:[#allocation4 + $0x6] sm:$0xff]
        %v400 = vld [vmem:[#allocation4 + $0xe] sm:$0xff]
        %v401 = vld [vmem:[#allocation4 + $0x7] sm:$0xff]
        %v402 = vld [vmem:[#allocation4 + $0xf] sm:$0xff]
        %v403 = vadd.f32 %v399, %v401
        %v404 = vadd.f32 %v400, %v402
        %v405 = vld [vmem:[#allocation4 + $0x8] sm:$0xff]
        %v406 = vld [vmem:[#allocation4 + $0x10] sm:$0xff]
        %v407 = vadd.f32 %v403, %v405
        %v408 = vadd.f32 %v404, %v406
        %v409 = vld [vmem:[#allocation4 + $0x9] sm:$0xff]
        %v410 = vld [vmem:[#allocation4 + $0x11] sm:$0xff]
        %v411 = vadd.f32 %v407, %v409
        %v412 = vadd.f32 %v408, %v410
        %v413 = vld [vmem:[#allocation4 + $0xa] sm:$0xff]
        %v414 = vld [vmem:[#allocation4 + $0x12] sm:$0xff]
        %v415 = vadd.f32 %v411, %v413
        %v416 = vadd.f32 %v412, %v414
        %417 = vrot.lane.b32.xlu0 %v415, 127
        %v418 = vpop.permute.xlu0 %417
        %419 = vrot.lane.b32.xlu0 %v416, 127
        %v420 = vpop.permute.xlu0 %419
        %421 = vrot.lane.b32.xlu0 %v415, 1
        %v422 = vpop.permute.xlu0 %421
        %423 = vrot.lane.b32.xlu0 %v416, 1
        %v424 = vpop.permute.xlu0 %423
        %v425 = vadd.f32 %v415, %v418
        %v426 = vadd.f32 %v416, %v420
        %v427 = vadd.f32 %v425, %v422
        %v428 = vadd.f32 %v426, %v424
        %429 = vrot.lane.b32.xlu0 %v415, 126
        %v430 = vpop.permute.xlu0 %429
        %431 = vrot.lane.b32.xlu0 %v416, 126
        %v432 = vpop.permute.xlu0 %431
        %433 = vrot.lane.b32.xlu0 %v415, 2
        %v434 = vpop.permute.xlu0 %433
        %435 = vrot.lane.b32.xlu0 %v416, 2
        %v436 = vpop.permute.xlu0 %435
        %v437 = vadd.f32 %v427, %v430
        %v438 = vadd.f32 %v428, %v432
        %v439 = vadd.f32 %v437, %v434
        %v440 = vadd.f32 %v438, %v436
        %v441 = vmul.f32 %v439, 0.04
        %v442 = vmul.f32 %v440, 0.04
        %v443 = vmul.f32 %v333, %v377
        %v444 = vmul.f32 %v334, %v378
        %v445 = vsub.f32 %v441, %v443
        %v446 = vsub.f32 %v442, %v444
        %v447 = vld [vmem:[#allocation2] sm:$0xff]
        %v448 = vld [vmem:[#allocation2 + $0x8] sm:$0xff]
        %v449 = vld [vmem:[#allocation2 + $0x10] sm:$0xff]
        %v450 = vld [vmem:[#allocation2 + $0x18] sm:$0xff]
        %v451 = vld [vmem:[#allocation2 + $0x20] sm:$0xff]
        %v452 = vmul.f32 %v447, %v447
        %v453 = vmul.f32 %v448, %v448
        %v454 = vmul.f32 %v449, %v449
        %v455 = vmul.f32 %v450, %v450
        %v456 = vmul.f32 %v451, %v451
        %457 = vst [vmem:[#allocation4] sm:$0xff] %v452
        %458 = vst [vmem:[#allocation4 + $0x8] sm:$0xff] %v453
        %459 = vst [vmem:[#allocation4 + $0x10] sm:$0xff] %v454
        %460 = vst [vmem:[#allocation4 + $0x18] sm:$0xff] %v455
        %461 = vst [vmem:[#allocation4 + $0x20] sm:$0xff] %v456
        %v462 = vld [vmem:[#allocation4 + $0x6] sm:$0xff]
        %v463 = vld [vmem:[#allocation4 + $0xe] sm:$0xff]
        %v464 = vld [vmem:[#allocation4 + $0x7] sm:$0xff]
        %v465 = vld [vmem:[#allocation4 + $0xf] sm:$0xff]
        %v466 = vadd.f32 %v462, %v464
        %v467 = vadd.f32 %v463, %v465
        %v468 = vld [vmem:[#allocation4 + $0x8] sm:$0xff]
        %v469 = vld [vmem:[#allocation4 + $0x10] sm:$0xff]
        %v470 = vadd.f32 %v466, %v468
        %v471 = vadd.f32 %v467, %v469
        %v472 = vld [vmem:[#allocation4 + $0x9] sm:$0xff]
        %v473 = vld [vmem:[#allocation4 + $0x11] sm:$0xff]
        %v474 = vadd.f32 %v470, %v472
        %v475 = vadd.f32 %v471, %v473
        %v476 = vld [vmem:[#allocation4 + $0xa] sm:$0xff]
        %v477 = vld [vmem:[#allocation4 + $0x12] sm:$0xff]
        %v478 = vadd.f32 %v474, %v476
        %v479 = vadd.f32 %v475, %v477
        %480 = vrot.lane.b32.xlu0 %v478, 127
        %v481 = vpop.permute.xlu0 %480
        %482 = vrot.lane.b32.xlu0 %v479, 127
        %v483 = vpop.permute.xlu0 %482
        %484 = vrot.lane.b32.xlu0 %v478, 1
        %v485 = vpop.permute.xlu0 %484
        %486 = vrot.lane.b32.xlu0 %v479, 1
        %v487 = vpop.permute.xlu0 %486
        %v488 = vadd.f32 %v478, %v481
        %v489 = vadd.f32 %v479, %v483
        %v490 = vadd.f32 %v488, %v485
        %v491 = vadd.f32 %v489, %v487
        %492 = vrot.lane.b32.xlu0 %v478, 126
        %v493 = vpop.permute.xlu0 %492
        %494 = vrot.lane.b32.xlu0 %v479, 126
        %v495 = vpop.permute.xlu0 %494
        %496 = vrot.lane.b32.xlu0 %v478, 2
        %v497 = vpop.permute.xlu0 %496
        %498 = vrot.lane.b32.xlu0 %v479, 2
        %v499 = vpop.permute.xlu0 %498
        %v500 = vadd.f32 %v490, %v493
        %v501 = vadd.f32 %v491, %v495
        %v502 = vadd.f32 %v500, %v497
        %v503 = vadd.f32 %v501, %v499
        %v504 = vmul.f32 %v502, 0.04
        %v505 = vmul.f32 %v503, 0.04
        %v506 = vmul.f32 %v333, %v333
        %v507 = vmul.f32 %v334, %v334
        %v508 = vsub.f32 %v504, %v506
        %v509 = vsub.f32 %v505, %v507
        %v510 = vld [vmem:[#allocation3] sm:$0xff]
        %v511 = vld [vmem:[#allocation3 + $0x8] sm:$0xff]
        %v512 = vld [vmem:[#allocation3 + $0x10] sm:$0xff]
        %v513 = vld [vmem:[#allocation3 + $0x18] sm:$0xff]
        %v514 = vld [vmem:[#allocation3 + $0x20] sm:$0xff]
        %v515 = vmul.f32 %v510, %v510
        %v516 = vmul.f32 %v511, %v511
        %v517 = vmul.f32 %v512, %v512
        %v518 = vmul.f32 %v513, %v513
        %v519 = vmul.f32 %v514, %v514
        %520 = vst [vmem:[#allocation4] sm:$0xff] %v515
        %521 = vst [vmem:[#allocation4 + $0x8] sm:$0xff] %v516
        %522 = vst [vmem:[#allocation4 + $0x10] sm:$0xff] %v517
        %523 = vst [vmem:[#allocation4 + $0x18] sm:$0xff] %v518
        %524 = vst [vmem:[#allocation4 + $0x20] sm:$0xff] %v519
        %v525 = vld [vmem:[#allocation4 + $0x6] sm:$0xff]
        %v526 = vld [vmem:[#allocation4 + $0xe] sm:$0xff]
        %v527 = vld [vmem:[#allocation4 + $0x7] sm:$0xff]
        %v528 = vld [vmem:[#allocation4 + $0xf] sm:$0xff]
        %v529 = vadd.f32 %v525, %v527
        %v530 = vadd.f32 %v526, %v528
        %v531 = vld [vmem:[#allocation4 + $0x8] sm:$0xff]
        %v532 = vld [vmem:[#allocation4 + $0x10] sm:$0xff]
        %v533 = vadd.f32 %v529, %v531
        %v534 = vadd.f32 %v530, %v532
        %v535 = vld [vmem:[#allocation4 + $0x9] sm:$0xff]
        %v536 = vld [vmem:[#allocation4 + $0x11] sm:$0xff]
        %v537 = vadd.f32 %v533, %v535
        %v538 = vadd.f32 %v534, %v536
        %v539 = vld [vmem:[#allocation4 + $0xa] sm:$0xff]
        %v540 = vld [vmem:[#allocation4 + $0x12] sm:$0xff]
        %v541 = vadd.f32 %v537, %v539
        %v542 = vadd.f32 %v538, %v540
        %543 = vrot.lane.b32.xlu0 %v541, 127
        %v544 = vpop.permute.xlu0 %543
        %545 = vrot.lane.b32.xlu0 %v542, 127
        %v546 = vpop.permute.xlu0 %545
        %547 = vrot.lane.b32.xlu0 %v541, 1
        %v548 = vpop.permute.xlu0 %547
        %549 = vrot.lane.b32.xlu0 %v542, 1
        %v550 = vpop.permute.xlu0 %549
        %v551 = vadd.f32 %v541, %v544
        %v552 = vadd.f32 %v542, %v546
        %v553 = vadd.f32 %v551, %v548
        %v554 = vadd.f32 %v552, %v550
        %555 = vrot.lane.b32.xlu0 %v541, 126
        %v556 = vpop.permute.xlu0 %555
        %557 = vrot.lane.b32.xlu0 %v542, 126
        %v558 = vpop.permute.xlu0 %557
        %559 = vrot.lane.b32.xlu0 %v541, 2
        %v560 = vpop.permute.xlu0 %559
        %561 = vrot.lane.b32.xlu0 %v542, 2
        %v562 = vpop.permute.xlu0 %561
        %v563 = vadd.f32 %v553, %v556
        %v564 = vadd.f32 %v554, %v558
        %v565 = vadd.f32 %v563, %v560
        %v566 = vadd.f32 %v564, %v562
        %v567 = vmul.f32 %v565, 0.04
        %v568 = vmul.f32 %v566, 0.04
        %v569 = vmul.f32 %v377, %v377
        %v570 = vmul.f32 %v378, %v378
        %v571 = vsub.f32 %v567, %v569
        %v572 = vsub.f32 %v568, %v570
        %v573 = vmul.f32 %v508, %v571
        %v574 = vmul.f32 %v509, %v572
        %v575 = vadd.f32 %v573, 0.0001
        %v576 = vadd.f32 %v574, 0.0001
        %v577 = vrsqrt.pop %v575
        %v578 = vrsqrt.pop %v576
        %v579 = vmul.f32 %v445, %v577
        %v580 = vmul.f32 %v446, %v578
        %v581 = vand.u32 2147483647, %v579
        %v582 = vand.u32 2147483647, %v580
        %583 = vst.msk [vmem:[%s229] sm:$0xff] %vm286, %v581
        %584 = vst.msk [vmem:[%s229 + $0x8] sm:$0xff] %vm286, %v582
        %v585 = vsel %vm286, %v581, 0.0
        %v586 = vsel %vm286, %v582, 0.0
        %v587 = vadd.f32 %v585, %v586
        %588 = vadd.xlane.f32.xlu0 %v587
        %v589 = vpop.xlane.xlu0 %588
        %v590 = vrot.slane %v589, 4
        %v591 = vadd.f32 %v589, %v590
        %v592 = vrot.slane %v591, 2
        %v593 = vadd.f32 %v591, %v592
        %v594 = vrot.slane %v593, 1
        %v595 = vadd.f32 %v593, %v594
        %s596 = vtos %v595
        %s597 = sadd.f32 %s596, 0.0
        %v598 = vstv %s597
        %599 = vst [vmem:[%s239] sm:$0xff] %v598
        %s600 = sand.u32 %s84, 1
        %s601 = scalar_lea.sflag [#allocation7], %s600
        %s602 = sand.u32 %s84, 1
        %s603 = smul.addr %s602, 16
        %s604 = scalar_lea.vmem [#allocation10], %s603
        %p605 = scmp.lt.s32.totalorder %s24, 1
        %s606 = scalar_select %p605, %s24, 1
        %s607 = smul.addr %s606, 8
        %s608 = scalar_lea.vmem %s3, %s607
        // Predicated region
        $region37: #{correlation_loss.1} parent=27 // pred_check
          %p609 = pneg %p94
        $region38: #{correlation_loss.1} parent=27 // pred_check_branch
          %611 = sbr.rel (%p609) target = $region40
        $region39: #{correlation_loss.1} parent=27 // pred_region
          %s613 = ssub.s32 256, 256
          %614 = vsyncadd %s601, %s613
          %s615 = smul.addr %s24, 2
          %s616 = smul.addr %s615, 128
          %s617 = scalar_lea.hbm %s2, %s616
          %s618 = sshll.u32 %s604, 4
          %s619 = int_to_ptr.vmem [resolvable:$true] %s618
          %624 = dma.vmem_to_hbm [thread:$0]  %s619, 256, %s617, %s601, 128, 128, 8
        $region40: #{correlation_loss.1} parent=27 // pred_fallthru
          _
        // Predicated region
        $region41: #{correlation_loss.1} parent=27 // pred_check
          %p625 = pneg %p120
        $region42: #{correlation_loss.1} parent=27 // pred_check_branch
          %627 = sbr.rel (%p625) target = $region44
        $region43: #{correlation_loss.1} parent=27 // pred_region
          _
        $region44: #{correlation_loss.1} parent=27 // pred_fallthru
          _
      $region28: #{correlation_loss.1} parent=5 // pred_fallthru
        _
      %p628 = scmp.le.s32.totalorder 2, %s19
      // Predicated region
      $region45: #{correlation_loss.1} parent=5 // pred_check
        %p629 = pneg %p628
      $region46: #{correlation_loss.1} parent=5 // pred_check_branch
        %631 = sbr.rel (%p629) target = $region48
      $region47: #{correlation_loss.1} parent=5 // pred_region
        %s632 = ssub.s32 %s19, 2
        // Predicated region
        $region49: #{correlation_loss.1} parent=47 // pred_check
          %p633 = pneg %p100
        $region50: #{correlation_loss.1} parent=47 // pred_check_branch
          %635 = sbr.rel (%p633) target = $region52
        $region51: #{correlation_loss.1} parent=47 // pred_region
          %s636 = sand.u32 %s85, 1
          %s637 = scalar_lea.sflag [#allocation7], %s636
          %s638 = sand.u32 %s85, 1
          %s639 = smul.addr %s638, 16
          %s640 = scalar_lea.vmem [#allocation10], %s639
          %641 = dma.done %s637, 256
        $region52: #{correlation_loss.1} parent=47 // pred_fallthru
          _
        // Predicated region
        $region53: #{correlation_loss.1} parent=47 // pred_check
          %p642 = pneg %p126
        $region54: #{correlation_loss.1} parent=47 // pred_check_branch
          %644 = sbr.rel (%p642) target = $region56
        $region55: #{correlation_loss.1} parent=47 // pred_region
          %p645 = scmp.lt.s32.totalorder %s25, 1
          %s646 = scalar_select %p645, %s25, 1
          %s647 = smul.addr %s646, 8
          %s648 = scalar_lea.vmem %s3, %s647
        $region56: #{correlation_loss.1} parent=47 // pred_fallthru
          _
      $region48: #{correlation_loss.1} parent=5 // pred_fallthru
        _
    $region6: #{correlation_loss.1} parent=1 // loop_footer
      %s23 = sadd.s32 1, %s19
    $region7: #{correlation_loss.1} parent=1 // loop_footer_branch
      %18 = sbr.rel target = $region3
    $region8: #{correlation_loss.1} parent=1 // loop_exit
      _
    %649 = vsyncpa [#allocation6], 1
    %s650 = scalar_lea.sflag [#allocation6], 1
    %651 = vsyncpa %s650, 1
    %652 = vsyncpa [#allocation9], 1
    %s653 = scalar_lea.sflag [#allocation9], 1
    %654 = vsyncpa %s653, 1
    %655 = vsyncpa [#allocation7], 1
    %s656 = scalar_lea.sflag [#allocation7], 1
    %657 = vsyncpa %s656, 1

</llo_original>
